<compile_context>
chip_gen: v6e
topology: v6e:2x2x1
jax: 0.10.0
libtpu: 0.0.40
codegen_flags: <defaults>
</compile_context>

<pallas_src>
import functools

import jax
import jax.numpy as jnp
from jax.experimental import pallas as pl
from jax.experimental.pallas import tpu as pltpu


def _gmdre_kernel(min_ref, max_ref, last_ref, p_ref, t_ref, o_ref,
                  acc_ref, pprev_ref, tprev_ref, *, inv_d):
    """One (row-tile i, feature-tile k) grid step.

    Accumulates sum_j log|ret_pred - ret_tgt| into acc_ref (per-row, resident
    across the feature axis) and carries the last denormalized column of each
    tile so daily returns stay correct across feature-tile borders.  All heavy
    elementwise work runs on lane-dense (nt, td) tiles; per-row state is O(1)
    ops per grid step (no O(N) / O(N^2) unrolled loops).
    """
    k = pl.program_id(1)

    minv = min_ref[...].astype(jnp.float32)                 # (nt, 1)
    scale = max_ref[...].astype(jnp.float32) - minv         # (nt, 1)

    @pl.when(k == 0)
    def _init():
        acc_ref[...] = jnp.zeros_like(acc_ref)
        last_denorm = last_ref[...].astype(jnp.float32) * scale + minv
        pprev_ref[...] = last_denorm
        tprev_ref[...] = last_denorm

    # Denormalize current tile (f32 math; D stays on the lane axis).
    p = p_ref[...].astype(jnp.float32) * scale + minv       # (nt, td)
    t = t_ref[...].astype(jnp.float32) * scale + minv       # (nt, td)

    # Daily returns for columns 1..td-1: previous element is inside the tile
    # (static lane slices only -- robust lowering, no gather/rotate needed).
    p_cur, p_prev = p[:, 1:], p[:, :-1]
    t_cur, t_prev = t[:, 1:], t[:, :-1]
    err_body = jnp.abs((p_cur - p_prev) / p_prev - (t_cur - t_prev) / t_prev)

    # Column 0: previous element is the carried value (denormalized last
    # feature at k == 0, previous feature-tile's last column otherwise).
    cp = pprev_ref[...]                                      # (nt, 1)
    ct = tprev_ref[...]
    p0, t0 = p[:, :1], t[:, :1]
    err0 = jnp.abs((p0 - cp) / cp - (t0 - ct) / ct)          # (nt, 1)

    # log -> EUP, lane reduce -> XLU; accumulate per-row log-sum.
    acc_ref[...] += (jnp.sum(jnp.log(err_body), axis=1, keepdims=True)
                     + jnp.log(err0))

    # Carry last denormalized column into the next feature tile.
    pprev_ref[...] = p[:, -1:]
    tprev_ref[...] = t[:, -1:]

    @pl.when(k == pl.num_programs(1) - 1)
    def _finalize():
        o_ref[...] = jnp.exp(acc_ref[...] * inv_d)           # per-row geomean


def _pick_tile(dim, candidates):
    for c in candidates:
        if dim % c == 0:
            return c
    return dim


def geometric_mean_daily_return_error(predictions, targets, last_features,
                                      norm_min, norm_max):
    assert predictions.shape == targets.shape
    assert predictions.ndim == 2
    n, d = predictions.shape

    # Row tiles shard across TensorCores ("parallel"); feature tiles are the
    # pipelined reduction axis ("arbitrary").  Tiles capped at 256 x 1024 f32
    # so 2 inputs x 2 pipeline buffers stay well under v7x's scoped-VMEM limit.
    nt = n if n <= 256 else _pick_tile(n, (256, 128, 64, 32, 16, 8))
    td = d if d <= 1024 else _pick_tile(d, (1024, 512, 256, 128))
    grid = (n // nt, d // td)

    grid_spec = pltpu.PrefetchScalarGridSpec(
        num_scalar_prefetch=0,
        grid=grid,
        in_specs=[
            pl.BlockSpec((nt, 1), lambda i, k: (i, 0)),     # norm_min
            pl.BlockSpec((nt, 1), lambda i, k: (i, 0)),     # norm_max
            pl.BlockSpec((nt, 1), lambda i, k: (i, 0)),     # last feature
            pl.BlockSpec((nt, td), lambda i, k: (i, k)),    # predictions
            pl.BlockSpec((nt, td), lambda i, k: (i, k)),    # targets
        ],
        out_specs=pl.BlockSpec((nt, 1), lambda i, k: (i, 0)),
        scratch_shapes=[
            pltpu.VMEM((nt, 1), jnp.float32),   # per-row log-sum accumulator
            pltpu.VMEM((nt, 1), jnp.float32),   # carried prev pred column
            pltpu.VMEM((nt, 1), jnp.float32),   # carried prev target column
        ],
    )

    itemsize = predictions.dtype.itemsize
    cost = pl.CostEstimate(
        flops=12 * n * d,                 # denorm + returns + abs + reduces
        transcendentals=n * d + n,        # log per element + exp per row
        bytes_accessed=2 * n * d * itemsize + 3 * n * 4 + n * 4,
    )

    per_series = pl.pallas_call(
        functools.partial(_gmdre_kernel, inv_d=1.0 / d),
        out_shape=jax.ShapeDtypeStruct((n, 1), jnp.float32),
        grid_spec=grid_spec,
        compiler_params=pltpu.CompilerParams(
            dimension_semantics=("parallel", "arbitrary"),
            vmem_limit_bytes=32 * 1024 * 1024,
        ),
        cost_estimate=cost,
    )(
        norm_min.reshape(n, 1).astype(jnp.float32),
        norm_max.reshape(n, 1).astype(jnp.float32),
        last_features.reshape(n, 1).astype(jnp.float32),
        predictions,
        targets,
    )

    # Tiny final arithmetic mean over the N per-series geometric means.
    return jnp.mean(per_series[:, 0])


if __name__ == "__main__":
    key = jax.random.PRNGKey(0)
    kp, kt, kf, kn = jax.random.split(key, 4)
    N, D = 8, 32

    # Normalized values in (0.2, 0.8) and positive denorm ranges so that
    # denormalized prices stay strictly positive (no divide-by-zero).
    predictions = jax.random.uniform(kp, (N, D), jnp.float32, 0.2, 0.8)
    targets = jax.random.uniform(kt, (N, D), jnp.float32, 0.2, 0.8)
    last_features = jax.random.uniform(kf, (N,), jnp.float32, 0.2, 0.8)
    norm_min = jax.random.uniform(kn, (N,), jnp.float32, 5.0, 10.0)
    norm_max = norm_min + 20.0

    result = jax.block_until_ready(
        geometric_mean_daily_return_error(
            predictions, targets, last_features, norm_min, norm_max))

    # Pure-JAX reference mirroring the torch/numpy forward pass.
    scale = norm_max - norm_min
    last_d = last_features * scale + norm_min
    p = predictions * scale[:, None] + norm_min[:, None]
    t = targets * scale[:, None] + norm_min[:, None]
    p_full = jnp.concatenate([last_d[:, None], p], axis=1)
    t_full = jnp.concatenate([last_d[:, None], t], axis=1)
    ret_p = jnp.diff(p_full, axis=1) / p_full[:, :-1]
    ret_t = jnp.diff(t_full, axis=1) / t_full[:, :-1]
    err = jnp.abs(ret_p - ret_t)
    ref = jnp.mean(jnp.exp(jnp.mean(jnp.log(err), axis=1)))

    assert jnp.allclose(result, ref, rtol=1e-4, atol=1e-6), (result, ref)
    print("KERNEL_OK")
</pallas_src>

<mosaic_0001>
module attributes {stable_mosaic.version = 11 : i64} {
  func.func @_gmdre_kernel(%arg0: i32, %arg1: i32, %arg2: memref<8x1xf32, #tpu.memory_space<vmem>>, %arg3: memref<8x1xf32, #tpu.memory_space<vmem>>, %arg4: memref<8x1xf32, #tpu.memory_space<vmem>>, %arg5: memref<8x32xf32, #tpu.memory_space<vmem>>, %arg6: memref<8x32xf32, #tpu.memory_space<vmem>>, %arg7: memref<8x1xf32, #tpu.memory_space<vmem>>, %arg8: memref<8x1xf32, #tpu.memory_space<vmem>>, %arg9: memref<8x1xf32, #tpu.memory_space<vmem>>, %arg10: memref<8x1xf32, #tpu.memory_space<vmem>>) attributes {dimension_semantics = [#tpu.dimension_semantics<parallel>, #tpu.dimension_semantics<arbitrary>], iteration_bounds = array<i64: 1, 1>, scalar_prefetch = 0 : i64, scratch_operands = 3 : i64, tpu.core_type = #tpu.core_type<tc>, window_params = [{transform_indices = @transform_0, window_bounds = array<i64: 8, 1>}, {transform_indices = @transform_1, window_bounds = array<i64: 8, 1>}, {transform_indices = @transform_2, window_bounds = array<i64: 8, 1>}, {transform_indices = @transform_3, window_bounds = array<i64: 8, 32>}, {transform_indices = @transform_4, window_bounds = array<i64: 8, 32>}, {transform_indices = @transform_5, window_bounds = array<i64: 8, 1>}]} {
    %c0 = arith.constant 0 : index
    %c0_0 = arith.constant 0 : index
    %0 = vector.load %arg2[%c0, %c0_0] : memref<8x1xf32, #tpu.memory_space<vmem>>, vector<8x1xf32>
    %c0_1 = arith.constant 0 : index
    %c0_2 = arith.constant 0 : index
    %1 = vector.load %arg3[%c0_1, %c0_2] : memref<8x1xf32, #tpu.memory_space<vmem>>, vector<8x1xf32>
    %2 = arith.subf %1, %0 : vector<8x1xf32>
    %c0_i32 = arith.constant 0 : i32
    %3 = arith.cmpi eq, %arg1, %c0_i32 : i32
    %4 = arith.extui %3 : i1 to i32
    %c0_i32_3 = arith.constant 0 : i32
    %5 = arith.cmpi ne, %4, %c0_i32_3 : i32
    scf.if %5 {
      %cst_22 = arith.constant 0.000000e+00 : f32
      %51 = vector.broadcast %cst_22 : f32 to vector<8x1xf32>
      %c0_23 = arith.constant 0 : index
      %c0_24 = arith.constant 0 : index
      %52 = vector.load %arg8[%c0_23, %c0_24] : memref<8x1xf32, #tpu.memory_space<vmem>>, vector<8x1xf32>
      tpu.vector_store %arg8[%c0_23, %c0_24], %51 {strides = array<i32>} : memref<8x1xf32, #tpu.memory_space<vmem>>, vector<8x1xf32>,
      %c0_25 = arith.constant 0 : index
      %c0_26 = arith.constant 0 : index
      %53 = vector.load %arg4[%c0_25, %c0_26] : memref<8x1xf32, #tpu.memory_space<vmem>>, vector<8x1xf32>
      %54 = arith.mulf %53, %2 : vector<8x1xf32>
      %55 = arith.addf %54, %0 : vector<8x1xf32>
      %c0_27 = arith.constant 0 : index
      %c0_28 = arith.constant 0 : index
      %56 = vector.load %arg9[%c0_27, %c0_28] : memref<8x1xf32, #tpu.memory_space<vmem>>, vector<8x1xf32>
      tpu.vector_store %arg9[%c0_27, %c0_28], %55 {strides = array<i32>} : memref<8x1xf32, #tpu.memory_space<vmem>>, vector<8x1xf32>,
      %c0_29 = arith.constant 0 : index
      %c0_30 = arith.constant 0 : index
      %57 = vector.load %arg10[%c0_29, %c0_30] : memref<8x1xf32, #tpu.memory_space<vmem>>, vector<8x1xf32>
      tpu.vector_store %arg10[%c0_29, %c0_30], %55 {strides = array<i32>} : memref<8x1xf32, #tpu.memory_space<vmem>>, vector<8x1xf32>,
    } else {
    }
    %c0_4 = arith.constant 0 : index
    %c0_5 = arith.constant 0 : index
    %6 = vector.load %arg5[%c0_4, %c0_5] : memref<8x32xf32, #tpu.memory_space<vmem>>, vector<8x32xf32>
    %7 = vector.broadcast %2 : vector<8x1xf32> to vector<8x32xf32>
    %8 = arith.mulf %6, %7 : vector<8x32xf32>
    %9 = vector.broadcast %0 : vector<8x1xf32> to vector<8x32xf32>
    %10 = arith.addf %8, %9 : vector<8x32xf32>
    %c0_6 = arith.constant 0 : index
    %c0_7 = arith.constant 0 : index
    %11 = vector.load %arg6[%c0_6, %c0_7] : memref<8x32xf32, #tpu.memory_space<vmem>>, vector<8x32xf32>
    %12 = vector.broadcast %2 : vector<8x1xf32> to vector<8x32xf32>
    %13 = arith.mulf %11, %12 : vector<8x32xf32>
    %14 = vector.broadcast %0 : vector<8x1xf32> to vector<8x32xf32>
    %15 = arith.addf %13, %14 : vector<8x32xf32>
    %16 = vector.extract_strided_slice %10 {offsets = [0, 1], sizes = [8, 31], strides = [1, 1]} : vector<8x32xf32> to vector<8x31xf32>
    %17 = vector.extract_strided_slice %10 {offsets = [0, 0], sizes = [8, 31], strides = [1, 1]} : vector<8x32xf32> to vector<8x31xf32>
    %18 = vector.extract_strided_slice %15 {offsets = [0, 1], sizes = [8, 31], strides = [1, 1]} : vector<8x32xf32> to vector<8x31xf32>
    %19 = vector.extract_strided_slice %15 {offsets = [0, 0], sizes = [8, 31], strides = [1, 1]} : vector<8x32xf32> to vector<8x31xf32>
    %20 = arith.subf %16, %17 : vector<8x31xf32>
    %21 = arith.divf %20, %17 : vector<8x31xf32>
    %22 = arith.subf %18, %19 : vector<8x31xf32>
    %23 = arith.divf %22, %19 : vector<8x31xf32>
    %24 = arith.subf %21, %23 : vector<8x31xf32>
    %25 = math.absf %24 : vector<8x31xf32>
    %c0_8 = arith.constant 0 : index
    %c0_9 = arith.constant 0 : index
    %26 = vector.load %arg9[%c0_8, %c0_9] : memref<8x1xf32, #tpu.memory_space<vmem>>, vector<8x1xf32>
    %c0_10 = arith.constant 0 : index
    %c0_11 = arith.constant 0 : index
    %27 = vector.load %arg10[%c0_10, %c0_11] : memref<8x1xf32, #tpu.memory_space<vmem>>, vector<8x1xf32>
    %28 = vector.extract_strided_slice %10 {offsets = [0, 0], sizes = [8, 1], strides = [1, 1]} : vector<8x32xf32> to vector<8x1xf32>
    %29 = vector.extract_strided_slice %15 {offsets = [0, 0], sizes = [8, 1], strides = [1, 1]} : vector<8x32xf32> to vector<8x1xf32>
    %30 = arith.subf %28, %26 : vector<8x1xf32>
    %31 = arith.divf %30, %26 : vector<8x1xf32>
    %32 = arith.subf %29, %27 : vector<8x1xf32>
    %33 = arith.divf %32, %27 : vector<8x1xf32>
    %34 = arith.subf %31, %33 : vector<8x1xf32>
    %35 = math.absf %34 : vector<8x1xf32>
    %c0_12 = arith.constant 0 : index
    %c0_13 = arith.constant 0 : index
    %36 = vector.load %arg8[%c0_12, %c0_13] : memref<8x1xf32, #tpu.memory_space<vmem>>, vector<8x1xf32>
    %37 = math.log %25 : vector<8x31xf32>
    %cst = arith.constant dense<0.000000e+00> : vector<8xf32>
    %38 = vector.multi_reduction <add>, %37, %cst [1] : vector<8x31xf32> to vector<8xf32>
    %39 = vector.shape_cast %38 : vector<8xf32> to vector<8x1xf32>
    %40 = math.log %35 : vector<8x1xf32>
    %41 = arith.addf %39, %40 : vector<8x1xf32>
    %42 = arith.addf %36, %41 : vector<8x1xf32>
    %c0_14 = arith.constant 0 : index
    %c0_15 = arith.constant 0 : index
    %43 = vector.load %arg8[%c0_14, %c0_15] : memref<8x1xf32, #tpu.memory_space<vmem>>, vector<8x1xf32>
    tpu.vector_store %arg8[%c0_14, %c0_15], %42 {strides = array<i32>} : memref<8x1xf32, #tpu.memory_space<vmem>>, vector<8x1xf32>,
    %44 = vector.extract_strided_slice %10 {offsets = [0, 31], sizes = [8, 1], strides = [1, 1]} : vector<8x32xf32> to vector<8x1xf32>
    %c0_16 = arith.constant 0 : index
    %c0_17 = arith.constant 0 : index
    %45 = vector.load %arg9[%c0_16, %c0_17] : memref<8x1xf32, #tpu.memory_space<vmem>>, vector<8x1xf32>
    tpu.vector_store %arg9[%c0_16, %c0_17], %44 {strides = array<i32>} : memref<8x1xf32, #tpu.memory_space<vmem>>, vector<8x1xf32>,
    %46 = vector.extract_strided_slice %15 {offsets = [0, 31], sizes = [8, 1], strides = [1, 1]} : vector<8x32xf32> to vector<8x1xf32>
    %c0_18 = arith.constant 0 : index
    %c0_19 = arith.constant 0 : index
    %47 = vector.load %arg10[%c0_18, %c0_19] : memref<8x1xf32, #tpu.memory_space<vmem>>, vector<8x1xf32>
    tpu.vector_store %arg10[%c0_18, %c0_19], %46 {strides = array<i32>} : memref<8x1xf32, #tpu.memory_space<vmem>>, vector<8x1xf32>,
    %c0_i32_20 = arith.constant 0 : i32
    %48 = arith.cmpi eq, %arg1, %c0_i32_20 : i32
    %49 = arith.extui %48 : i1 to i32
    %c0_i32_21 = arith.constant 0 : i32
    %50 = arith.cmpi ne, %49, %c0_i32_21 : i32
    scf.if %50 {
      %c0_22 = arith.constant 0 : index
      %c0_23 = arith.constant 0 : index
      %51 = vector.load %arg8[%c0_22, %c0_23] : memref<8x1xf32, #tpu.memory_space<vmem>>, vector<8x1xf32>
      %cst_24 = arith.constant 3.125000e-02 : f32
      %52 = vector.broadcast %cst_24 : f32 to vector<8x1xf32>
      %53 = arith.mulf %51, %52 : vector<8x1xf32>
      %54 = math.exp %53 : vector<8x1xf32>
      %c0_25 = arith.constant 0 : index
      %c0_26 = arith.constant 0 : index
      %55 = vector.load %arg7[%c0_25, %c0_26] : memref<8x1xf32, #tpu.memory_space<vmem>>, vector<8x1xf32>
      tpu.vector_store %arg7[%c0_25, %c0_26], %54 {strides = array<i32>} : memref<8x1xf32, #tpu.memory_space<vmem>>, vector<8x1xf32>,
    } else {
    }
    return
  }
  func.func @transform_0(%arg0: i32, %arg1: i32) -> (i32, i32) {
    %c0_i32 = arith.constant 0 : i32
    %c0_i32_0 = arith.constant 0 : i32
    return %arg0, %c0_i32 : i32, i32
  }
  func.func @transform_1(%arg0: i32, %arg1: i32) -> (i32, i32) {
    %c0_i32 = arith.constant 0 : i32
    %c0_i32_0 = arith.constant 0 : i32
    return %arg0, %c0_i32 : i32, i32
  }
  func.func @transform_2(%arg0: i32, %arg1: i32) -> (i32, i32) {
    %c0_i32 = arith.constant 0 : i32
    %c0_i32_0 = arith.constant 0 : i32
    return %arg0, %c0_i32 : i32, i32
  }
  func.func @transform_3(%arg0: i32, %arg1: i32) -> (i32, i32) {
    %c0_i32 = arith.constant 0 : i32
    return %arg0, %arg1 : i32, i32
  }
  func.func @transform_4(%arg0: i32, %arg1: i32) -> (i32, i32) {
    %c0_i32 = arith.constant 0 : i32
    return %arg0, %arg1 : i32, i32
  }
  func.func @transform_5(%arg0: i32, %arg1: i32) -> (i32, i32) {
    %c0_i32 = arith.constant 0 : i32
    %c0_i32_0 = arith.constant 0 : i32
    return %arg0, %c0_i32 : i32, i32
  }
}

</mosaic_0001>

<llo_original>
// kernel: tpu_custom_call.1
$region0: #{tpu_custom_call.1}
  #allocation0 [shape = 'u32[]', space=smem, size = 0x4, offset = 0x4, fixed_abs, tag = 'smem constant byte address 0x4 - core index']
  #allocation1 [shape = 'u32[144,128]{1,0:T(1,128)}', space=vmem, size = 0x12000, scoped, tag = 'internal scratch']
  #allocation2 [shape = 'f32[8,1]{1,0:T(8,128)}', space=vmem, size = 0x1000, scoped, tag = 'scratch operand']
  #allocation3 [shape = 'f32[8,1]{1,0:T(8,128)}', space=vmem, size = 0x1000, scoped, tag = 'scratch operand']
  #allocation4 [shape = 'f32[8,1]{1,0:T(8,128)}', space=vmem, size = 0x1000, scoped, tag = 'scratch operand']
  %s0 = inlined_call_operand.vmem [shape: f32[8,1], index: 0, kind: input, shape index: {}]
  %s1 = inlined_call_operand.vmem [shape: f32[8,1], index: 1, kind: input, shape index: {}]
  %s2 = inlined_call_operand.vmem [shape: f32[8,1], index: 2, kind: input, shape index: {}]
  %s3 = inlined_call_operand.vmem [shape: f32[8,32], index: 3, kind: input, shape index: {}]
  %s4 = inlined_call_operand.vmem [shape: f32[8,32], index: 4, kind: input, shape index: {}]
  %s5 = inlined_call_operand.vmem [shape: f32[8,1], index: 5, kind: output, shape index: {}]
  %s6 = sld [smem:[#allocation0]]
  $region38: #{tpu_custom_call.1} parent=0
    _
  %s8 = ssub.s32 1, %s6
  %s9 = scalar_select 0, %s8, %s6
  // Predicated region
  $region2: #{tpu_custom_call.1} parent=0 // pred_check
    _
  $region3: #{tpu_custom_call.1} parent=0 // pred_check_branch
    %11 = sbr.rel (0) target = $region5
  $region4: #{tpu_custom_call.1} parent=0 // pred_region
    _
  $region5: #{tpu_custom_call.1} parent=0 // pred_fallthru
    _
  // Predicated region
  $region6: #{tpu_custom_call.1} parent=0 // pred_check
    _
  $region7: #{tpu_custom_call.1} parent=0 // pred_check_branch
    %13 = sbr.rel (0) target = $region9
  $region8: #{tpu_custom_call.1} parent=0 // pred_region
    _
  $region9: #{tpu_custom_call.1} parent=0 // pred_fallthru
    _
  // Predicated region
  $region10: #{tpu_custom_call.1} parent=0 // pred_check
    _
  $region11: #{tpu_custom_call.1} parent=0 // pred_check_branch
    %15 = sbr.rel (0) target = $region13
  $region12: #{tpu_custom_call.1} parent=0 // pred_region
    _
  $region13: #{tpu_custom_call.1} parent=0 // pred_fallthru
    _
  // Predicated region
  $region14: #{tpu_custom_call.1} parent=0 // pred_check
    _
  $region15: #{tpu_custom_call.1} parent=0 // pred_check_branch
    %17 = sbr.rel (0) target = $region17
  $region16: #{tpu_custom_call.1} parent=0 // pred_region
    _
  $region17: #{tpu_custom_call.1} parent=0 // pred_fallthru
    _
  // Predicated region
  $region18: #{tpu_custom_call.1} parent=0 // pred_check
    _
  $region19: #{tpu_custom_call.1} parent=0 // pred_check_branch
    %19 = sbr.rel (0) target = $region21
  $region20: #{tpu_custom_call.1} parent=0 // pred_region
    _
  $region21: #{tpu_custom_call.1} parent=0 // pred_fallthru
    _
  %v20 = vld [vmem:[%s0] sm:$0xff]
  %v21 = vld [vmem:[%s1] sm:$0xff]
  %v22 = vsub.f32 %v21, %v20
  %p23 = scmp.eq.s32.totalorder 0, 0
  // Predicated region
  $region22: #{tpu_custom_call.1} parent=0 // pred_check
    %p24 = pneg %p23
  $region23: #{tpu_custom_call.1} parent=0 // pred_check_branch
    %26 = sbr.rel (%p24) target = $region25
  $region24: #{tpu_custom_call.1} parent=0 // pred_region
    %vm27 = vcmask 7168
    %28 = vst.msk [vmem:[#allocation2] sm:$0xff] %vm27, 0.0
    %v29 = vld [vmem:[%s2] sm:$0xff]
    %v30 = vmul.f32 %v29, %v22
    %v31 = vadd.f32 %v30, %v20
    %32 = vst.msk [vmem:[#allocation3] sm:$0xff] %vm27, %v31
    %33 = vst.msk [vmem:[#allocation4] sm:$0xff] %vm27, %v31
  $region25: #{tpu_custom_call.1} parent=0 // pred_fallthru
    _
  %v34 = vld [vmem:[%s3] sm:$0xff]
  %36 = vset.pattern.permute.xlu0 0
  %37 = vperm.xlu0 %36, %v22
  %v38 = vpop.permute.xlu0 %37
  %v40 = vmul.f32 %v34, %v38
  %42 = vset.pattern.permute.xlu0 0
  %43 = vperm.xlu0 %42, %v20
  %v44 = vpop.permute.xlu0 %43
  %v46 = vadd.f32 %v40, %v44
  %v47 = vld [vmem:[%s4] sm:$0xff]
  %v48 = vmul.f32 %v47, %v38
  %v49 = vadd.f32 %v48, %v44
  %51 = vrot.lane.b32.xlu0 %v46, 1
  %v52 = vpop.permute.xlu0 %51
  %v54 = vsub.f32 %v46, %v52
  %v55 = vrcp.pop %v52
  %v56 = vmul.f32 %v54, %v55
  %58 = vrot.lane.b32.xlu0 %v49, 1
  %v59 = vpop.permute.xlu0 %58
  %v61 = vsub.f32 %v49, %v59
  %v62 = vrcp.pop %v59
  %v63 = vmul.f32 %v61, %v62
  %v64 = vsub.f32 %v56, %v63
  %v65 = vand.u32 2147483647, %v64
  %v66 = vld [vmem:[#allocation3] sm:$0xff]
  %v67 = vld [vmem:[#allocation4] sm:$0xff]
  %v68 = vsub.f32 %v46, %v66
  %v69 = vrcp.pop %v66
  %v70 = vmul.f32 %v68, %v69
  %v71 = vsub.f32 %v49, %v67
  %v72 = vrcp.pop %v67
  %v73 = vmul.f32 %v71, %v72
  %v74 = vsub.f32 %v70, %v73
  %v75 = vand.u32 2147483647, %v74
  %v76 = vld [vmem:[#allocation2] sm:$0xff]
  %v77 = vlog2.pop %v65
  %v78 = vmul.f32 %v77, 0.6931472
  %80 = vrot.lane.b32.xlu0 %v78, 127
  %v81 = vpop.permute.xlu0 %80
  %vm83 = vcmask 252928
  %v84 = vsel %vm83, %v81, 0.0
  %85 = vadd.xlane.f32.xlu0 %v84
  %v86 = vpop.xlane.xlu0 %85
  %v87 = vlog2.pop %v75
  %v88 = vmul.f32 %v87, 0.6931472
  %v89 = vadd.f32 %v86, %v88
  %v90 = vadd.f32 %v76, %v89
  %vm91 = vcmask 7168
  %92 = vst.msk [vmem:[#allocation2] sm:$0xff] %vm91, %v90
  %93 = vrot.lane.b32.xlu0 %v46, 97
  %v94 = vpop.permute.xlu0 %93
  %96 = vst.msk [vmem:[#allocation3] sm:$0xff] %vm91, %v94
  %97 = vrot.lane.b32.xlu0 %v49, 97
  %v98 = vpop.permute.xlu0 %97
  %100 = vst.msk [vmem:[#allocation4] sm:$0xff] %vm91, %v98
  // Predicated region
  $region26: #{tpu_custom_call.1} parent=0 // pred_check
    %p101 = pneg %p23
  $region27: #{tpu_custom_call.1} parent=0 // pred_check_branch
    %103 = sbr.rel (%p101) target = $region29
  $region28: #{tpu_custom_call.1} parent=0 // pred_region
    %v104 = vld [vmem:[#allocation2] sm:$0xff]
    %v105 = vmul.f32 %v104, 0.03125
    %v106 = vmul.f32 %v105, 1.442695
    %v107 = vpow.pop %v106
    %108 = vst.msk [vmem:[%s5] sm:$0xff] %vm91, %v107
  $region29: #{tpu_custom_call.1} parent=0 // pred_fallthru
    _
  // Predicated region
  $region30: #{tpu_custom_call.1} parent=0 // pred_check
    _
  $region31: #{tpu_custom_call.1} parent=0 // pred_check_branch
    %110 = sbr.rel (0) target = $region33
  $region32: #{tpu_custom_call.1} parent=0 // pred_region
    _
  $region33: #{tpu_custom_call.1} parent=0 // pred_fallthru
    _
  // Predicated region
  $region34: #{tpu_custom_call.1} parent=0 // pred_check
    _
  $region35: #{tpu_custom_call.1} parent=0 // pred_check_branch
    %112 = sbr.rel (0) target = $region37
  $region36: #{tpu_custom_call.1} parent=0 // pred_region
    _
  $region37: #{tpu_custom_call.1} parent=0 // pred_fallthru
    _

</llo_original>
